<compile_context>
chip_gen: v6e
topology: v6e:2x2x1
jax: 0.10.0
libtpu: 0.0.40
codegen_flags: <defaults>
</compile_context>

<pallas_src>
import jax
import jax.numpy as jnp
from jax.experimental import pallas as pl
from jax.experimental.pallas import tpu as pltpu


def _round_up(x, m):
    return ((x + m - 1) // m) * m


def p_project_kernel(pt_ref, w_ref, out_ref):
    """Stage 1: A[x, (j,kk)] = sum_i Pt[x, i] * W2d[i, (j,kk)].

    pt_ref : [cout_p, cout]  (resident across the grid; constant index_map)
    w_ref  : [cout,   bn]    one lane-block of W2d = meta.reshape(cout, cin*KK)
    out_ref: [cout_p, bn]
    """
    out_ref[...] = jnp.dot(
        pt_ref[...], w_ref[...], preferred_element_type=jnp.float32
    ).astype(out_ref.dtype)


def q_project_kernel(a_ref, q_ref, out_ref):
    """Stage 2: out[(x,kk), y] = sum_j A2[(x,kk), j] * Qpad[j, y].

    a_ref  : [cout_p*KK, cin]
    q_ref  : [cin, cin_p_pad]        (cin_p zero-padded to a 128 multiple)
    out_ref: [cout_p*KK, cin_p_pad]  lane-dense stores (last dim % 128 == 0)
    """
    out_ref[...] = jnp.dot(
        a_ref[...], q_ref[...], preferred_element_type=jnp.float32
    ).astype(out_ref.dtype)


def tprojection_forward(meta_weights, P, Q, *, mxu_dtype=None, block_n=1152):
    """TProjection.forward: einsum('ijhw,ix,jy->xyhw', meta_weights, P, Q).

    meta_weights: [cout, cin, k, k] f32, P: [cout, cout_p], Q: [cin, cin_p].
    Returns [cout_p, cin_p, k, k] f32.

    mxu_dtype: optionally cast MXU operands (e.g. jnp.bfloat16) while keeping
      f32 accumulation and f32 outputs (helps v5e most; also v6e/v7x).
    """
    cout, cin, kh, kw = meta_weights.shape
    cout_p = P.shape[1]
    cin_p = Q.shape[1]
    KK = kh * kw

    # DETACH_PQ = True in the reference module (forward-pass no-op).
    P = jax.lax.stop_gradient(P)
    Q = jax.lax.stop_gradient(Q)

    # ---- Stage 1: cout -> cout_p projection over the *contiguous* weight view.
    w2d = meta_weights.reshape(cout, cin * KK)   # contiguous reshape: no HBM pass
    pt = P.T                                     # [cout_p, cout]; tiny, hoisted

    if mxu_dtype is not None:
        w2d = w2d.astype(mxu_dtype)
        pt = pt.astype(mxu_dtype)

    n_tot = cin * KK
    bn = n_tot if n_tot <= block_n else block_n  # big blocks are 128-multiples
    grid = (pl.cdiv(n_tot, bn),)

    a = pl.pallas_call(
        p_project_kernel,
        out_shape=jax.ShapeDtypeStruct((cout_p, n_tot), jnp.float32),
        grid=grid,
        in_specs=[
            pl.BlockSpec((cout_p, cout), lambda n: (0, 0)),  # P^T stays resident
            pl.BlockSpec((cout, bn), lambda n: (0, n)),      # stream W2d blocks
        ],
        out_specs=pl.BlockSpec((cout_p, bn), lambda n: (0, n)),
        compiler_params=pltpu.CompilerParams(
            dimension_semantics=("parallel",),  # 2 TCs on v7x; harmless on v5e/v6e
            vmem_limit_bytes=48 * 1024 * 1024,  # fits v7x's 64 MiB VMEM with room
        ),
    )(pt, w2d)

    # ---- Tiny intermediate relayout (cout/cout_p x smaller than meta_weights):
    # [cout_p, (cin, KK)] -> [cout_p*KK, cin], done by XLA in the wrapper so the
    # kernels only ever see plain 2-D lane-dense matmul operands.
    a2 = jnp.transpose(a.reshape(cout_p, cin, KK), (0, 2, 1)).reshape(
        cout_p * KK, cin)

    # ---- Stage 2: cin -> cin_p projection fused over all KK taps (M=cout_p*KK),
    # output lane dim padded to a multiple of 128 for unmasked stores.
    cin_p_pad = _round_up(cin_p, 128)
    q_pad = jnp.pad(Q, ((0, 0), (0, cin_p_pad - cin_p)))
    if mxu_dtype is not None:
        a2 = a2.astype(mxu_dtype)
        q_pad = q_pad.astype(mxu_dtype)

    out2 = pl.pallas_call(
        q_project_kernel,
        out_shape=jax.ShapeDtypeStruct((cout_p * KK, cin_p_pad), jnp.float32),
        in_specs=[
            pl.BlockSpec(memory_space=pltpu.MemorySpace.VMEM),
            pl.BlockSpec(memory_space=pltpu.MemorySpace.VMEM),
        ],
        out_specs=pl.BlockSpec(memory_space=pltpu.MemorySpace.VMEM),
    )(a2, q_pad)

    # ---- Restore the PyTorch [cout_p, cin_p, k, k] layout (all tiny tensors).
    out = out2.reshape(cout_p, KK, cin_p_pad)[:, :, :cin_p]
    return jnp.transpose(out, (0, 2, 1)).reshape(cout_p, cin_p, kh, kw)


def init_projection(key, meta_c, curr_c, candidate_width, overlap=1.0):
    """Deterministic replica of TProjection._init_projection."""
    if meta_c == curr_c == 3:
        return jnp.eye(3, dtype=jnp.float32)
    W = jnp.zeros((meta_c, curr_c), dtype=jnp.float32)
    ind = candidate_width.index(curr_c)
    cum_c = 0
    if ind != 0:
        for id_p in range(ind):
            cum_c += int((1 - overlap) * candidate_width[id_p])
    W = W.at[cum_c:cum_c + curr_c, :].set(jnp.eye(curr_c, dtype=jnp.float32))
    W = W + jax.random.normal(key, (meta_c, curr_c), dtype=jnp.float32) * 0.01
    return W


if __name__ == "__main__":
    # BASE_WIDTH candidate widths from the reference module; meta (one-shot)
    # channels = max candidate width, projected channels = a searched width.
    candidate_width = [32, 48, 64, 80]   # BASE_WIDTH
    cout, cin = 80, 80                   # meta (one-shot) channels
    cout_p, cin_p = 32, 32               # projected (searched) channels
    k = 3                                # conv kernel size
    overlap = 1.0                        # OVERLAP in the reference

    key = jax.random.PRNGKey(0)
    k_w, k_p, k_q = jax.random.split(key, 3)

    meta_weights = jax.random.normal(k_w, (cout, cin, k, k), dtype=jnp.float32)
    P = init_projection(k_p, cout, cout_p, candidate_width, overlap)
    Q = init_projection(k_q, cin, cin_p, candidate_width, overlap)

    out = tprojection_forward(meta_weights, P, Q)
    out = jax.block_until_ready(out)

    # Reference check against the einsum semantics of `project`.
    ref = jnp.einsum('ijhw,ix,jy->xyhw', meta_weights, P, Q)
    assert out.shape == (cout_p, cin_p, k, k)
    assert jnp.allclose(out, ref, atol=1e-4, rtol=1e-4), float(
        jnp.max(jnp.abs(out - ref)))

    print("KERNEL_OK")
</pallas_src>

<mosaic_0001>
module attributes {stable_mosaic.version = 11 : i64} {
  func.func @p_project_kernel(%arg0: i32, %arg1: memref<32x80xf32, #tpu.memory_space<vmem>>, %arg2: memref<80x720xf32, #tpu.memory_space<vmem>>, %arg3: memref<32x720xf32, #tpu.memory_space<vmem>>) attributes {dimension_semantics = [#tpu.dimension_semantics<parallel>], iteration_bounds = array<i64: 1>, scalar_prefetch = 0 : i64, scratch_operands = 0 : i64, tpu.core_type = #tpu.core_type<tc>, window_params = [{pipeline_mode = #tpu.pipeline_mode<synchronous>, transform_indices = @transform_0, window_bounds = array<i64: 32, 80>}, {transform_indices = @transform_1, window_bounds = array<i64: 80, 720>}, {transform_indices = @transform_2, window_bounds = array<i64: 32, 720>}]} {
    %c0 = arith.constant 0 : index
    %c0_0 = arith.constant 0 : index
    %0 = vector.load %arg1[%c0, %c0_0] : memref<32x80xf32, #tpu.memory_space<vmem>>, vector<32x80xf32>
    %c0_1 = arith.constant 0 : index
    %c0_2 = arith.constant 0 : index
    %1 = vector.load %arg2[%c0_1, %c0_2] : memref<80x720xf32, #tpu.memory_space<vmem>>, vector<80x720xf32>
    %cst = arith.constant dense<0.000000e+00> : vector<32x720xf32>
    %2 = tpu.matmul %0, %1, %cst {dimension_numbers = #tpu.dot_dimension_numbers<[1], [0], [0], [1], [0, 0, 1, 1], [], []>} : vector<32x80xf32>, vector<80x720xf32>, vector<32x720xf32> -> vector<32x720xf32>
    %c0_3 = arith.constant 0 : index
    %c0_4 = arith.constant 0 : index
    %3 = vector.load %arg3[%c0_3, %c0_4] : memref<32x720xf32, #tpu.memory_space<vmem>>, vector<32x720xf32>
    tpu.vector_store %arg3[%c0_3, %c0_4], %2 {strides = array<i32>} : memref<32x720xf32, #tpu.memory_space<vmem>>, vector<32x720xf32>,
    return
  }
  func.func @transform_0(%arg0: i32) -> (i32, i32) {
    %c0_i32 = arith.constant 0 : i32
    %c0_i32_0 = arith.constant 0 : i32
    %c0_i32_1 = arith.constant 0 : i32
    return %c0_i32, %c0_i32_0 : i32, i32
  }
  func.func @transform_1(%arg0: i32) -> (i32, i32) {
    %c0_i32 = arith.constant 0 : i32
    %c0_i32_0 = arith.constant 0 : i32
    return %c0_i32, %arg0 : i32, i32
  }
  func.func @transform_2(%arg0: i32) -> (i32, i32) {
    %c0_i32 = arith.constant 0 : i32
    %c0_i32_0 = arith.constant 0 : i32
    return %c0_i32, %arg0 : i32, i32
  }
}

</mosaic_0001>

<llo_original>
// kernel: tpu_custom_call.1
$region0: #{tpu_custom_call.1}
  #allocation0 [shape = 'u32[]', space=smem, size = 0x4, offset = 0x4, fixed_abs, tag = 'smem constant byte address 0x4 - core index']
  #allocation1 [shape = 'u32[144,128]{1,0:T(1,128)}', space=vmem, size = 0x12000, scoped, tag = 'internal scratch']
  %s0 = inlined_call_operand.hbm [shape: f32[32,80], index: 0, kind: input, shape index: {}]
  %s1 = inlined_call_operand.hbm [shape: f32[80,720], index: 1, kind: input, shape index: {}]
  %s2 = inlined_call_operand.hbm [shape: f32[32,720], index: 2, kind: output, shape index: {}]
  %s3 = sld [smem:[#allocation0]]
  $region26: #{tpu_custom_call.1} parent=0
    _
  %s5 = ssub.s32 1, %s3
  %s6 = scalar_select 0, %s5, %s3
  $region1: #{tpu_custom_call.1} parent=0
    #allocation2 [shape = 'u8[16384]{0}', space=vmem, size = 0x4000, scoped, tag = 'input window, operand 0, single buffered']
    #allocation3 [shape = 's32[1]{0}', space=sflag, size = 0x4, scoped, tag = 'scoped memory for tpu_custom_call.1']
    #allocation4 [shape = 's32[1]{0}', space=sflag, size = 0x4, scoped, tag = 'scoped memory for tpu_custom_call.1']
    #allocation5 [shape = 'u8[245760]{0}', space=vmem, size = 0x3c000, scoped, tag = 'input window, operand 1, single buffered']
    #allocation6 [shape = 's32[1]{0}', space=sflag, size = 0x4, scoped, tag = 'scoped memory for tpu_custom_call.1']
    #allocation7 [shape = 'u8[98304]{0}', space=vmem, size = 0x18000, scoped, tag = 'output window, operand 0, single buffered']
    %7 = vsyncpa [#allocation3], 0
    %8 = vsyncpa [#allocation6], 0
    %9 = vsyncpa [#allocation4], 0
    // Predicated region
    $region2: #{tpu_custom_call.1} parent=1 // pred_check
      _
    $region3: #{tpu_custom_call.1} parent=1 // pred_check_branch
      %11 = sbr.rel (0) target = $region5
    $region4: #{tpu_custom_call.1} parent=1 // pred_region
      %s13 = ssub.s32 512, 512
      %14 = vsyncadd [#allocation3], %s13
      %s15 = sshll.u32 [#allocation2], 4
      %s16 = int_to_ptr.vmem [resolvable:$true] %s15
      %21 = dma.hbm_to_vmem [thread:$0]  %s0, 512, %s16, [#allocation3], 128, 128, 8
    $region5: #{tpu_custom_call.1} parent=1 // pred_fallthru
      _
    // Predicated region
    $region6: #{tpu_custom_call.1} parent=1 // pred_check
      _
    $region7: #{tpu_custom_call.1} parent=1 // pred_check_branch
      %23 = sbr.rel (0) target = $region9
    $region8: #{tpu_custom_call.1} parent=1 // pred_region
      %s25 = ssub.s32 7680, 7680
      %26 = vsyncadd [#allocation6], %s25
      %s27 = sshll.u32 [#allocation5], 4
      %s28 = int_to_ptr.vmem [resolvable:$true] %s27
      %33 = dma.hbm_to_vmem [thread:$0]  %s1, 7680, %s28, [#allocation6], 768, 768, 48
    $region9: #{tpu_custom_call.1} parent=1 // pred_fallthru
      _
    // Predicated region
    $region10: #{tpu_custom_call.1} parent=1 // pred_check
      _
    $region11: #{tpu_custom_call.1} parent=1 // pred_check_branch
      %35 = sbr.rel (0) target = $region13
    $region12: #{tpu_custom_call.1} parent=1 // pred_region
      %36 = dma.done [#allocation3], 512
    $region13: #{tpu_custom_call.1} parent=1 // pred_fallthru
      _
    // Predicated region
    $region14: #{tpu_custom_call.1} parent=1 // pred_check
      _
    $region15: #{tpu_custom_call.1} parent=1 // pred_check_branch
      %38 = sbr.rel (0) target = $region17
    $region16: #{tpu_custom_call.1} parent=1 // pred_region
      %39 = dma.done [#allocation6], 7680
    $region17: #{tpu_custom_call.1} parent=1 // pred_fallthru
      _
    %v40 = vld [vmem:[#allocation2] sm:$0xff]
    %v41 = vld [vmem:[#allocation2 + $0x8] sm:$0xff]
    %v42 = vld [vmem:[#allocation2 + $0x10] sm:$0xff]
    %v43 = vld [vmem:[#allocation2 + $0x18] sm:$0xff]
    %v44 = vld [vmem:[#allocation5] sm:$0xff]
    %v45 = vld [vmem:[#allocation5 + $0x8] sm:$0xff]
    %v46 = vld [vmem:[#allocation5 + $0x10] sm:$0xff]
    %v47 = vld [vmem:[#allocation5 + $0x18] sm:$0xff]
    %v48 = vld [vmem:[#allocation5 + $0x20] sm:$0xff]
    %v49 = vld [vmem:[#allocation5 + $0x28] sm:$0xff]
    %v50 = vld [vmem:[#allocation5 + $0x30] sm:$0xff]
    %v51 = vld [vmem:[#allocation5 + $0x38] sm:$0xff]
    %v52 = vld [vmem:[#allocation5 + $0x40] sm:$0xff]
    %v53 = vld [vmem:[#allocation5 + $0x48] sm:$0xff]
    %v54 = vld [vmem:[#allocation5 + $0x50] sm:$0xff]
    %v55 = vld [vmem:[#allocation5 + $0x58] sm:$0xff]
    %v56 = vld [vmem:[#allocation5 + $0x60] sm:$0xff]
    %v57 = vld [vmem:[#allocation5 + $0x68] sm:$0xff]
    %v58 = vld [vmem:[#allocation5 + $0x70] sm:$0xff]
    %v59 = vld [vmem:[#allocation5 + $0x78] sm:$0xff]
    %v60 = vld [vmem:[#allocation5 + $0x80] sm:$0xff]
    %v61 = vld [vmem:[#allocation5 + $0x88] sm:$0xff]
    %v62 = vld [vmem:[#allocation5 + $0x90] sm:$0xff]
    %v63 = vld [vmem:[#allocation5 + $0x98] sm:$0xff]
    %v64 = vld [vmem:[#allocation5 + $0xa0] sm:$0xff]
    %v65 = vld [vmem:[#allocation5 + $0xa8] sm:$0xff]
    %v66 = vld [vmem:[#allocation5 + $0xb0] sm:$0xff]
    %v67 = vld [vmem:[#allocation5 + $0xb8] sm:$0xff]
    %v68 = vld [vmem:[#allocation5 + $0xc0] sm:$0xff]
    %v69 = vld [vmem:[#allocation5 + $0xc8] sm:$0xff]
    %v70 = vld [vmem:[#allocation5 + $0xd0] sm:$0xff]
    %v71 = vld [vmem:[#allocation5 + $0xd8] sm:$0xff]
    %v72 = vld [vmem:[#allocation5 + $0xe0] sm:$0xff]
    %v73 = vld [vmem:[#allocation5 + $0xe8] sm:$0xff]
    %v74 = vld [vmem:[#allocation5 + $0xf0] sm:$0xff]
    %v75 = vld [vmem:[#allocation5 + $0xf8] sm:$0xff]
    %v76 = vld [vmem:[#allocation5 + $0x100] sm:$0xff]
    %v77 = vld [vmem:[#allocation5 + $0x108] sm:$0xff]
    %v78 = vld [vmem:[#allocation5 + $0x110] sm:$0xff]
    %v79 = vld [vmem:[#allocation5 + $0x118] sm:$0xff]
    %v80 = vld [vmem:[#allocation5 + $0x120] sm:$0xff]
    %v81 = vld [vmem:[#allocation5 + $0x128] sm:$0xff]
    %v82 = vld [vmem:[#allocation5 + $0x130] sm:$0xff]
    %v83 = vld [vmem:[#allocation5 + $0x138] sm:$0xff]
    %v84 = vld [vmem:[#allocation5 + $0x140] sm:$0xff]
    %v85 = vld [vmem:[#allocation5 + $0x148] sm:$0xff]
    %v86 = vld [vmem:[#allocation5 + $0x150] sm:$0xff]
    %v87 = vld [vmem:[#allocation5 + $0x158] sm:$0xff]
    %v88 = vld [vmem:[#allocation5 + $0x160] sm:$0xff]
    %v89 = vld [vmem:[#allocation5 + $0x168] sm:$0xff]
    %v90 = vld [vmem:[#allocation5 + $0x170] sm:$0xff]
    %v91 = vld [vmem:[#allocation5 + $0x178] sm:$0xff]
    %v92 = vld [vmem:[#allocation5 + $0x180] sm:$0xff]
    %v93 = vld [vmem:[#allocation5 + $0x188] sm:$0xff]
    %v94 = vld [vmem:[#allocation5 + $0x190] sm:$0xff]
    %v95 = vld [vmem:[#allocation5 + $0x198] sm:$0xff]
    %v96 = vld [vmem:[#allocation5 + $0x1a0] sm:$0xff]
    %v97 = vld [vmem:[#allocation5 + $0x1a8] sm:$0xff]
    %v98 = vld [vmem:[#allocation5 + $0x1b0] sm:$0xff]
    %v99 = vld [vmem:[#allocation5 + $0x1b8] sm:$0xff]
    %v100 = vld [vmem:[#allocation5 + $0x1c0] sm:$0xff]
    %v101 = vld [vmem:[#allocation5 + $0x1c8] sm:$0xff]
    %v102 = vld [vmem:[#allocation5 + $0x1d0] sm:$0xff]
    %v103 = vld [vmem:[#allocation5 + $0x1d8] sm:$0xff]
    %vm104 = vcmask 654336
    %v106 = vsel %vm104, %v40, 0
    %v109 = vsel %vm104, %v41, 0
    %v112 = vsel %vm104, %v42, 0
    %v115 = vsel %vm104, %v43, 0
    %117 = vmatprep.subr.mxu0 0.0
    %118 = vmatpush1.msra.mxu0 0.0
    %119 = vmatprep.subr.mxu0 0.0
    %120 = vmatpush1.msra.mxu0 0.0
    %121 = vmatprep.subr.mxu0 0.0
    %122 = vmatpush1.msra.mxu0 0.0
    %123 = vmatprep.subr.mxu0 0.0
    %124 = vmatpush1.msra.mxu0 0.0
    %125 = vmatprep.subr.mxu0 0.0
    %126 = vmatpush1.msra.mxu0 0.0
    %127 = vmatprep.subr.mxu0 0.0
    %128 = vmatpush1.msra.mxu0 0.0
    %129 = vmatprep.subr.mxu0 %v99
    %130 = vmatpush1.msra.mxu0 %v98
    %131 = vmatprep.subr.mxu0 %v93
    %132 = vmatpush1.msra.mxu0 %v92
    %133 = vmatprep.subr.mxu0 %v87
    %134 = vmatpush1.msra.mxu0 %v86
    %135 = vmatprep.subr.mxu0 %v81
    %136 = vmatpush1.msra.mxu0 %v80
    %137 = vmatprep.subr.mxu0 %v75
    %138 = vmatpush1.msra.mxu0 %v74
    %139 = vmatprep.subr.mxu0 %v69
    %140 = vmatpush1.msra.mxu0 %v68
    %141 = vmatprep.subr.mxu0 %v63
    %142 = vmatpush1.msra.mxu0 %v62
    %143 = vmatprep.subr.mxu0 %v57
    %144 = vmatpush1.msra.mxu0 %v56
    %145 = vmatprep.subr.mxu0 %v51
    %146 = vmatpush1.msra.mxu0 %v50
    %147 = vmatprep.subr.mxu0 %v45
    %148 = vmatpush1.msra.mxu0 %v44
    %149 = vmatprep.subr.mxu0 0.0
    %150 = vmatpush2.msra.mxu0 0.0
    %151 = vmatprep.subr.mxu0 0.0
    %152 = vmatpush2.msra.mxu0 0.0
    %153 = vmatprep.subr.mxu0 0.0
    %154 = vmatpush2.msra.mxu0 0.0
    %155 = vmatprep.subr.mxu0 0.0
    %156 = vmatpush2.msra.mxu0 0.0
    %157 = vmatprep.subr.mxu0 0.0
    %158 = vmatpush2.msra.mxu0 0.0
    %159 = vmatprep.subr.mxu0 0.0
    %160 = vmatpush2.msra.mxu0 0.0
    %161 = vmatprep.subr.mxu0 0.0
    %162 = vmatpush2.msra.mxu0 0.0
    %163 = vmatprep.subr.mxu0 0.0
    %164 = vmatpush2.msra.mxu0 0.0
    %165 = vmatprep.subr.mxu0 0.0
    %166 = vmatpush2.msra.mxu0 0.0
    %167 = vmatprep.subr.mxu0 0.0
    %168 = vmatpush2.msra.mxu0 0.0
    %169 = vmatprep.subr.mxu0 0.0
    %170 = vmatpush2.msra.mxu0 0.0
    %171 = vmatprep.subr.mxu0 0.0
    %172 = vmatpush2.msra.mxu0 0.0
    %173 = vmatprep.subr.mxu0 0.0
    %174 = vmatpush2.msra.mxu0 0.0
    %175 = vmatprep.subr.mxu0 0.0
    %176 = vmatpush2.msra.mxu0 0.0
    %177 = vmatprep.subr.mxu0 0.0
    %178 = vmatpush2.msra.mxu0 0.0
    %179 = vmatprep.subr.mxu0 0.0
    %180 = vmatpush2.msra.mxu0 0.0
    %181 = vmatprep.mubr.f32.mxu0 0.0
    %182 = vmatmul.mubr.f32.gmra.mxu0 %v106
    %v183 = vpop.f32.mrf.mxu0
    %v184 = vadd.f32 0.0, %v183
    %v185 = vpop.f32.mrf.mxu0
    %v186 = vadd.f32 0.0, %v185
    %187 = vmatprep.mubr.f32.mxu0 0.0
    %188 = vmatmul.mubr.f32.gmra.mxu0 %v109
    %v189 = vpop.f32.mrf.mxu0
    %v190 = vadd.f32 0.0, %v189
    %v191 = vpop.f32.mrf.mxu0
    %v192 = vadd.f32 0.0, %v191
    %193 = vmatprep.mubr.f32.mxu0 0.0
    %194 = vmatmul.mubr.f32.gmra.mxu0 %v112
    %v195 = vpop.f32.mrf.mxu0
    %v196 = vadd.f32 0.0, %v195
    %v197 = vpop.f32.mrf.mxu0
    %v198 = vadd.f32 0.0, %v197
    %199 = vmatprep.mubr.f32.mxu0 0.0
    %200 = vmatmul.mubr.f32.gmra.mxu0 %v115
    %v201 = vpop.f32.mrf.mxu0
    %v202 = vadd.f32 0.0, %v201
    %v203 = vpop.f32.mrf.mxu0
    %v204 = vadd.f32 0.0, %v203
    %205 = vdwg.mxu0
    %206 = vmatprep.subr.mxu0 0.0
    %207 = vmatpush1.msra.mxu0 0.0
    %208 = vmatprep.subr.mxu0 0.0
    %209 = vmatpush1.msra.mxu0 0.0
    %210 = vmatprep.subr.mxu0 0.0
    %211 = vmatpush1.msra.mxu0 0.0
    %212 = vmatprep.subr.mxu0 0.0
    %213 = vmatpush1.msra.mxu0 0.0
    %214 = vmatprep.subr.mxu0 0.0
    %215 = vmatpush1.msra.mxu0 0.0
    %216 = vmatprep.subr.mxu0 0.0
    %217 = vmatpush1.msra.mxu0 0.0
    %218 = vmatprep.subr.mxu0 %v101
    %219 = vmatpush1.msra.mxu0 %v100
    %220 = vmatprep.subr.mxu0 %v95
    %221 = vmatpush1.msra.mxu0 %v94
    %222 = vmatprep.subr.mxu0 %v89
    %223 = vmatpush1.msra.mxu0 %v88
    %224 = vmatprep.subr.mxu0 %v83
    %225 = vmatpush1.msra.mxu0 %v82
    %226 = vmatprep.subr.mxu0 %v77
    %227 = vmatpush1.msra.mxu0 %v76
    %228 = vmatprep.subr.mxu0 %v71
    %229 = vmatpush1.msra.mxu0 %v70
    %230 = vmatprep.subr.mxu0 %v65
    %231 = vmatpush1.msra.mxu0 %v64
    %232 = vmatprep.subr.mxu0 %v59
    %233 = vmatpush1.msra.mxu0 %v58
    %234 = vmatprep.subr.mxu0 %v53
    %235 = vmatpush1.msra.mxu0 %v52
    %236 = vmatprep.subr.mxu0 %v47
    %237 = vmatpush1.msra.mxu0 %v46
    %238 = vmatprep.subr.mxu0 0.0
    %239 = vmatpush2.msra.mxu0 0.0
    %240 = vmatprep.subr.mxu0 0.0
    %241 = vmatpush2.msra.mxu0 0.0
    %242 = vmatprep.subr.mxu0 0.0
    %243 = vmatpush2.msra.mxu0 0.0
    %244 = vmatprep.subr.mxu0 0.0
    %245 = vmatpush2.msra.mxu0 0.0
    %246 = vmatprep.subr.mxu0 0.0
    %247 = vmatpush2.msra.mxu0 0.0
    %248 = vmatprep.subr.mxu0 0.0
    %249 = vmatpush2.msra.mxu0 0.0
    %250 = vmatprep.subr.mxu0 0.0
    %251 = vmatpush2.msra.mxu0 0.0
    %252 = vmatprep.subr.mxu0 0.0
    %253 = vmatpush2.msra.mxu0 0.0
    %254 = vmatprep.subr.mxu0 0.0
    %255 = vmatpush2.msra.mxu0 0.0
    %256 = vmatprep.subr.mxu0 0.0
    %257 = vmatpush2.msra.mxu0 0.0
    %258 = vmatprep.subr.mxu0 0.0
    %259 = vmatpush2.msra.mxu0 0.0
    %260 = vmatprep.subr.mxu0 0.0
    %261 = vmatpush2.msra.mxu0 0.0
    %262 = vmatprep.subr.mxu0 0.0
    %263 = vmatpush2.msra.mxu0 0.0
    %264 = vmatprep.subr.mxu0 0.0
    %265 = vmatpush2.msra.mxu0 0.0
    %266 = vmatprep.subr.mxu0 0.0
    %267 = vmatpush2.msra.mxu0 0.0
    %268 = vmatprep.subr.mxu0 0.0
    %269 = vmatpush2.msra.mxu0 0.0
    %270 = vmatprep.mubr.f32.mxu0 0.0
    %271 = vmatmul.mubr.f32.gmra.mxu0 %v106
    %v272 = vpop.f32.mrf.mxu0
    %v273 = vadd.f32 0.0, %v272
    %v274 = vpop.f32.mrf.mxu0
    %v275 = vadd.f32 0.0, %v274
    %276 = vmatprep.mubr.f32.mxu0 0.0
    %277 = vmatmul.mubr.f32.gmra.mxu0 %v109
    %v278 = vpop.f32.mrf.mxu0
    %v279 = vadd.f32 0.0, %v278
    %v280 = vpop.f32.mrf.mxu0
    %v281 = vadd.f32 0.0, %v280
    %282 = vmatprep.mubr.f32.mxu0 0.0
    %283 = vmatmul.mubr.f32.gmra.mxu0 %v112
    %v284 = vpop.f32.mrf.mxu0
    %v285 = vadd.f32 0.0, %v284
    %v286 = vpop.f32.mrf.mxu0
    %v287 = vadd.f32 0.0, %v286
    %288 = vmatprep.mubr.f32.mxu0 0.0
    %289 = vmatmul.mubr.f32.gmra.mxu0 %v115
    %v290 = vpop.f32.mrf.mxu0
    %v291 = vadd.f32 0.0, %v290
    %v292 = vpop.f32.mrf.mxu0
    %v293 = vadd.f32 0.0, %v292
    %294 = vdwg.mxu0
    %295 = vmatprep.subr.mxu0 0.0
    %296 = vmatpush1.msra.mxu0 0.0
    %297 = vmatprep.subr.mxu0 0.0
    %298 = vmatpush1.msra.mxu0 0.0
    %299 = vmatprep.subr.mxu0 0.0
    %300 = vmatpush1.msra.mxu0 0.0
    %301 = vmatprep.subr.mxu0 0.0
    %302 = vmatpush1.msra.mxu0 0.0
    %303 = vmatprep.subr.mxu0 0.0
    %304 = vmatpush1.msra.mxu0 0.0
    %305 = vmatprep.subr.mxu0 0.0
    %306 = vmatpush1.msra.mxu0 0.0
    %307 = vmatprep.subr.mxu0 %v103
    %308 = vmatpush1.msra.mxu0 %v102
    %309 = vmatprep.subr.mxu0 %v97
    %310 = vmatpush1.msra.mxu0 %v96
    %311 = vmatprep.subr.mxu0 %v91
    %312 = vmatpush1.msra.mxu0 %v90
    %313 = vmatprep.subr.mxu0 %v85
    %314 = vmatpush1.msra.mxu0 %v84
    %315 = vmatprep.subr.mxu0 %v79
    %316 = vmatpush1.msra.mxu0 %v78
    %317 = vmatprep.subr.mxu0 %v73
    %318 = vmatpush1.msra.mxu0 %v72
    %319 = vmatprep.subr.mxu0 %v67
    %320 = vmatpush1.msra.mxu0 %v66
    %321 = vmatprep.subr.mxu0 %v61
    %322 = vmatpush1.msra.mxu0 %v60
    %323 = vmatprep.subr.mxu0 %v55
    %324 = vmatpush1.msra.mxu0 %v54
    %325 = vmatprep.subr.mxu0 %v49
    %326 = vmatpush1.msra.mxu0 %v48
    %327 = vmatprep.subr.mxu0 0.0
    %328 = vmatpush2.msra.mxu0 0.0
    %329 = vmatprep.subr.mxu0 0.0
    %330 = vmatpush2.msra.mxu0 0.0
    %331 = vmatprep.subr.mxu0 0.0
    %332 = vmatpush2.msra.mxu0 0.0
    %333 = vmatprep.subr.mxu0 0.0
    %334 = vmatpush2.msra.mxu0 0.0
    %335 = vmatprep.subr.mxu0 0.0
    %336 = vmatpush2.msra.mxu0 0.0
    %337 = vmatprep.subr.mxu0 0.0
    %338 = vmatpush2.msra.mxu0 0.0
    %339 = vmatprep.subr.mxu0 0.0
    %340 = vmatpush2.msra.mxu0 0.0
    %341 = vmatprep.subr.mxu0 0.0
    %342 = vmatpush2.msra.mxu0 0.0
    %343 = vmatprep.subr.mxu0 0.0
    %344 = vmatpush2.msra.mxu0 0.0
    %345 = vmatprep.subr.mxu0 0.0
    %346 = vmatpush2.msra.mxu0 0.0
    %347 = vmatprep.subr.mxu0 0.0
    %348 = vmatpush2.msra.mxu0 0.0
    %349 = vmatprep.subr.mxu0 0.0
    %350 = vmatpush2.msra.mxu0 0.0
    %351 = vmatprep.subr.mxu0 0.0
    %352 = vmatpush2.msra.mxu0 0.0
    %353 = vmatprep.subr.mxu0 0.0
    %354 = vmatpush2.msra.mxu0 0.0
    %355 = vmatprep.subr.mxu0 0.0
    %356 = vmatpush2.msra.mxu0 0.0
    %357 = vmatprep.subr.mxu0 0.0
    %358 = vmatpush2.msra.mxu0 0.0
    %359 = vmatprep.mubr.f32.mxu0 0.0
    %360 = vmatmul.mubr.f32.gmra.mxu0 %v106
    %v361 = vpop.f32.mrf.mxu0
    %v362 = vadd.f32 0.0, %v361
    %v363 = vpop.f32.mrf.mxu0
    %v364 = vadd.f32 0.0, %v363
    %365 = vmatprep.mubr.f32.mxu0 0.0
    %366 = vmatmul.mubr.f32.gmra.mxu0 %v109
    %v367 = vpop.f32.mrf.mxu0
    %v368 = vadd.f32 0.0, %v367
    %v369 = vpop.f32.mrf.mxu0
    %v370 = vadd.f32 0.0, %v369
    %371 = vmatprep.mubr.f32.mxu0 0.0
    %372 = vmatmul.mubr.f32.gmra.mxu0 %v112
    %v373 = vpop.f32.mrf.mxu0
    %v374 = vadd.f32 0.0, %v373
    %v375 = vpop.f32.mrf.mxu0
    %v376 = vadd.f32 0.0, %v375
    %377 = vmatprep.mubr.f32.mxu0 0.0
    %378 = vmatmul.mubr.f32.gmra.mxu0 %v115
    %v379 = vpop.f32.mrf.mxu0
    %v380 = vadd.f32 0.0, %v379
    %v381 = vpop.f32.mrf.mxu0
    %v382 = vadd.f32 0.0, %v381
    %383 = vdwg.mxu0
    %384 = vst [vmem:[#allocation7] sm:$0xff] %v184
    %385 = vst [vmem:[#allocation7 + $0x8] sm:$0xff] %v186
    %386 = vst [vmem:[#allocation7 + $0x10] sm:$0xff] %v273
    %387 = vst [vmem:[#allocation7 + $0x18] sm:$0xff] %v275
    %388 = vst [vmem:[#allocation7 + $0x20] sm:$0xff] %v362
    %389 = vst.msk [vmem:[#allocation7 + $0x28] sm:$0xff] %vm104, %v364
    %390 = vst [vmem:[#allocation7 + $0x30] sm:$0xff] %v190
    %391 = vst [vmem:[#allocation7 + $0x38] sm:$0xff] %v192
    %392 = vst [vmem:[#allocation7 + $0x40] sm:$0xff] %v279
    %393 = vst [vmem:[#allocation7 + $0x48] sm:$0xff] %v281
    %394 = vst [vmem:[#allocation7 + $0x50] sm:$0xff] %v368
    %395 = vst.msk [vmem:[#allocation7 + $0x58] sm:$0xff] %vm104, %v370
    %396 = vst [vmem:[#allocation7 + $0x60] sm:$0xff] %v196
    %397 = vst [vmem:[#allocation7 + $0x68] sm:$0xff] %v198
    %398 = vst [vmem:[#allocation7 + $0x70] sm:$0xff] %v285
    %399 = vst [vmem:[#allocation7 + $0x78] sm:$0xff] %v287
    %400 = vst [vmem:[#allocation7 + $0x80] sm:$0xff] %v374
    %401 = vst.msk [vmem:[#allocation7 + $0x88] sm:$0xff] %vm104, %v376
    %402 = vst [vmem:[#allocation7 + $0x90] sm:$0xff] %v202
    %403 = vst [vmem:[#allocation7 + $0x98] sm:$0xff] %v204
    %404 = vst [vmem:[#allocation7 + $0xa0] sm:$0xff] %v291
    %405 = vst [vmem:[#allocation7 + $0xa8] sm:$0xff] %v293
    %406 = vst [vmem:[#allocation7 + $0xb0] sm:$0xff] %v380
    %407 = vst.msk [vmem:[#allocation7 + $0xb8] sm:$0xff] %vm104, %v382
    // Predicated region
    $region18: #{tpu_custom_call.1} parent=1 // pred_check
      _
    $region19: #{tpu_custom_call.1} parent=1 // pred_check_branch
      %409 = sbr.rel (0) target = $region21
    $region20: #{tpu_custom_call.1} parent=1 // pred_region
      %s411 = ssub.s32 3072, 3072
      %412 = vsyncadd [#allocation4], %s411
      %s413 = sshll.u32 [#allocation7], 4
      %s414 = int_to_ptr.vmem [resolvable:$true] %s413
      %419 = dma.vmem_to_hbm [thread:$0]  %s414, 3072, %s2, [#allocation4], 768, 768, 48
    $region21: #{tpu_custom_call.1} parent=1 // pred_fallthru
      _
    // Predicated region
    $region22: #{tpu_custom_call.1} parent=1 // pred_check
      _
    $region23: #{tpu_custom_call.1} parent=1 // pred_check_branch
      %421 = sbr.rel (0) target = $region25
    $region24: #{tpu_custom_call.1} parent=1 // pred_region
      %422 = dma.done [#allocation4], 3072
    $region25: #{tpu_custom_call.1} parent=1 // pred_fallthru
      _
    %423 = vsyncpa [#allocation3], 1
    %424 = vsyncpa [#allocation6], 1
    %425 = vsyncpa [#allocation4], 1

</llo_original>
